<compile_context>
chip_gen: v5e
topology: v5e:2x2
jax: 0.10.0
libtpu: 0.0.40
codegen_flags: <defaults>
</compile_context>

<pallas_src>
import functools

import jax
import jax.numpy as jnp
from jax.experimental import pallas as pl
from jax.experimental.pallas import tpu as pltpu


def _round_up(n, m):
    return ((n + m - 1) // m) * m


def mlp_kernel(x_ref, w1_ref, b1_ref, w2_ref, b2_ref, o_ref):
    # Cast x to the MXU dtype in-kernel (cheap VPU op; avoids a separate XLA
    # cast pass over x in HBM).
    x = x_ref[...].astype(w1_ref.dtype)
    # fc1 on the MXU: bf16 operands, f32 accumulation.
    h = jnp.dot(x, w1_ref[...], preferred_element_type=jnp.float32)
    # Bias + ReLU in f32 on the VPU (v5e has no bf16 elementwise path).
    h = jnp.maximum(h + b1_ref[...], 0.0)
    # final linear: cast activation back to the MXU dtype, accumulate in f32.
    y = jnp.dot(h.astype(w2_ref.dtype), w2_ref[...],
                preferred_element_type=jnp.float32)
    o_ref[...] = (y + b2_ref[...]).astype(o_ref.dtype)


def prepare_params(w1, b1, w2, b2, *, mxu_dtype=jnp.bfloat16):
    """One-time (init path) pad + cast of the MLP parameters.

    w1: (in_dim, hidden), b1: (1, hidden), w2: (hidden, classes), b2: (1, classes).
    Zero-pads in_dim/hidden/classes to multiples of 128 (numerically neutral)
    and casts the matmul operands to the MXU dtype. Biases stay f32.
    """
    in_dim, hidden = w1.shape
    num_classes = w2.shape[1]
    kp = _round_up(in_dim, 128)
    hp = _round_up(hidden, 128)
    cp = _round_up(num_classes, 128)
    w1p = jnp.pad(w1, ((0, kp - in_dim), (0, hp - hidden))).astype(mxu_dtype)
    b1p = jnp.pad(b1, ((0, 0), (0, hp - hidden))).astype(jnp.float32)
    w2p = jnp.pad(w2, ((0, hp - hidden), (0, cp - num_classes))).astype(mxu_dtype)
    b2p = jnp.pad(b2, ((0, 0), (0, cp - num_classes))).astype(jnp.float32)
    return w1p, b1p, w2p, b2p


def _pick_batch_tile(batch, block_m):
    """Batch tile: multiple of 16 (bf16 sublane packing), low padding waste,
    and >= 2 grid steps when batch permits (keeps both v7x TCs busy)."""
    n_tiles = max((batch + block_m - 1) // block_m, 1)
    if n_tiles == 1 and batch >= 32:
        n_tiles = 2
    return _round_up(-(-batch // n_tiles), 16)


@functools.partial(jax.jit, static_argnames=("num_classes", "block_m"))
def mlp_forward(x, w1, b1, w2, b2, *, num_classes, block_m=256):
    """Fused MLP forward: relu(x @ w1 + b1) @ w2 + b2 -> f32 logits.

    Expects parameters already padded/cast by prepare_params(); only the
    activation is padded (batch to the tile, in_dim to 128) per call, in f32.
    """
    batch, in_dim = x.shape
    kp, hp = w1.shape
    cp = w2.shape[1]

    tm = _pick_batch_tile(batch, block_m)
    bp = _round_up(batch, tm)

    if bp != batch or kp != in_dim:
        x = jnp.pad(x, ((0, bp - batch), (0, kp - in_dim)))

    grid = (bp // tm,)

    # VMEM budget: single-buffered resident weights/biases + double-buffered
    # x / out tiles + headroom for the (tm, hp) f32 intermediate.
    resident = (w1.size + w2.size) * w1.dtype.itemsize + (b1.size + b2.size) * 4
    streamed = 2 * tm * kp * 4 + 2 * tm * cp * 4
    scratch = tm * hp * 4
    vmem_limit = int(min(64 << 20, max(8 << 20, 2 * (resident + streamed + scratch))))

    cost = pl.CostEstimate(
        flops=2 * bp * (kp * hp + hp * cp),
        transcendentals=0,
        bytes_accessed=bp * kp * 4 + resident + bp * cp * 4,
    )

    out = pl.pallas_call(
        mlp_kernel,
        out_shape=jax.ShapeDtypeStruct((bp, cp), jnp.float32),
        grid_spec=pltpu.PrefetchScalarGridSpec(
            num_scalar_prefetch=0,
            grid=grid,
            in_specs=[
                # x: batch-tiled, f32 in HBM (cast to bf16 inside the kernel).
                pl.BlockSpec((tm, kp), lambda i: (i, 0)),
                # Resident weights/biases: constant block -> single-buffer.
                pl.BlockSpec((kp, hp), lambda i: (0, 0),
                             pipeline_mode=pl.Buffered(1)),
                pl.BlockSpec((1, hp), lambda i: (0, 0),
                             pipeline_mode=pl.Buffered(1)),
                pl.BlockSpec((hp, cp), lambda i: (0, 0),
                             pipeline_mode=pl.Buffered(1)),
                pl.BlockSpec((1, cp), lambda i: (0, 0),
                             pipeline_mode=pl.Buffered(1)),
            ],
            out_specs=pl.BlockSpec((tm, cp), lambda i: (i, 0)),
        ),
        compiler_params=pltpu.CompilerParams(
            dimension_semantics=("parallel",),
            vmem_limit_bytes=vmem_limit,
        ),
        cost_estimate=cost,
    )(x, w1, b1, w2, b2)

    return out[:batch, :num_classes]


def init_params(key, input_size, hidden_size, num_classes, dtype=jnp.float32):
    """Deterministic PyTorch-style Linear init (uniform +-1/sqrt(fan_in)),
    stored as (in_features, out_features) == torch W^T."""
    k1, k2, k3, k4 = jax.random.split(key, 4)
    bound1 = 1.0 / jnp.sqrt(input_size)
    bound2 = 1.0 / jnp.sqrt(hidden_size)
    w1 = jax.random.uniform(k1, (input_size, hidden_size), dtype,
                            minval=-bound1, maxval=bound1)
    b1 = jax.random.uniform(k2, (1, hidden_size), dtype,
                            minval=-bound1, maxval=bound1)
    w2 = jax.random.uniform(k3, (hidden_size, num_classes), dtype,
                            minval=-bound2, maxval=bound2)
    b2 = jax.random.uniform(k4, (1, num_classes), dtype,
                            minval=-bound2, maxval=bound2)
    return w1, b1, w2, b2


if __name__ == "__main__":
    # Small shapes consistent with the module:
    # MLP(input_size=32, hidden_size=[64], num_classes=10) on (batch, input_size).
    batch, input_size, hidden, num_classes = 8, 32, 64, 10

    key = jax.random.PRNGKey(0)
    kx, kparams = jax.random.split(key)
    x = jax.random.normal(kx, (batch, input_size), jnp.float32)
    w1, b1, w2, b2 = init_params(kparams, input_size, hidden, num_classes)

    # One-time pad/cast of the parameters (init path, outside the hot loop).
    w1p, b1p, w2p, b2p = prepare_params(w1, b1, w2, b2)

    y = mlp_forward(x, w1p, b1p, w2p, b2p, num_classes=num_classes)
    jax.block_until_ready(y)
    assert y.shape == (batch, num_classes)

    # Reference in plain JAX with matching MXU precision
    # (bf16 operands, f32 accumulate), same semantics as the PyTorch forward.
    cast = lambda a: a.astype(jnp.bfloat16).astype(jnp.float32)
    h_ref = jnp.maximum(cast(x) @ cast(w1) + b1, 0.0)
    ref = cast(h_ref) @ cast(w2) + b2
    assert jnp.allclose(y, ref, atol=2e-4, rtol=2e-4)

    print("KERNEL_OK")
</pallas_src>

<mosaic_0001>
module attributes {stable_mosaic.version = 11 : i64} {
  func.func @mlp_kernel(%arg0: i32, %arg1: memref<16x128xf32, #tpu.memory_space<vmem>>, %arg2: memref<128x128xbf16, #tpu.memory_space<vmem>>, %arg3: memref<1x128xf32, #tpu.memory_space<vmem>>, %arg4: memref<128x128xbf16, #tpu.memory_space<vmem>>, %arg5: memref<1x128xf32, #tpu.memory_space<vmem>>, %arg6: memref<16x128xf32, #tpu.memory_space<vmem>>) attributes {dimension_semantics = [#tpu.dimension_semantics<parallel>], iteration_bounds = array<i64: 1>, scalar_prefetch = 0 : i64, scratch_operands = 0 : i64, tpu.core_type = #tpu.core_type<tc>, window_params = [{transform_indices = @transform_0, window_bounds = array<i64: 16, 128>}, {pipeline_mode = #tpu.pipeline_mode<synchronous>, transform_indices = @transform_1, window_bounds = array<i64: 128, 128>}, {pipeline_mode = #tpu.pipeline_mode<synchronous>, transform_indices = @transform_2, window_bounds = array<i64: 1, 128>}, {pipeline_mode = #tpu.pipeline_mode<synchronous>, transform_indices = @transform_3, window_bounds = array<i64: 128, 128>}, {pipeline_mode = #tpu.pipeline_mode<synchronous>, transform_indices = @transform_4, window_bounds = array<i64: 1, 128>}, {transform_indices = @transform_5, window_bounds = array<i64: 16, 128>}]} {
    %c0 = arith.constant 0 : index
    %c0_0 = arith.constant 0 : index
    %0 = vector.load %arg1[%c0, %c0_0] : memref<16x128xf32, #tpu.memory_space<vmem>>, vector<16x128xf32>
    %1 = arith.truncf %0 : vector<16x128xf32> to vector<16x128xbf16>
    %c0_1 = arith.constant 0 : index
    %c0_2 = arith.constant 0 : index
    %2 = vector.load %arg2[%c0_1, %c0_2] : memref<128x128xbf16, #tpu.memory_space<vmem>>, vector<128x128xbf16>
    %cst = arith.constant dense<0.000000e+00> : vector<16x128xf32>
    %3 = tpu.matmul %1, %2, %cst {dimension_numbers = #tpu.dot_dimension_numbers<[1], [0], [0], [1], [0, 0, 1, 1], [], []>} : vector<16x128xbf16>, vector<128x128xbf16>, vector<16x128xf32> -> vector<16x128xf32>
    %c0_3 = arith.constant 0 : index
    %c0_4 = arith.constant 0 : index
    %4 = vector.load %arg3[%c0_3, %c0_4] : memref<1x128xf32, #tpu.memory_space<vmem>>, vector<1x128xf32>
    %5 = vector.broadcast %4 : vector<1x128xf32> to vector<16x128xf32>
    %6 = arith.addf %3, %5 : vector<16x128xf32>
    %cst_5 = arith.constant 0.000000e+00 : f32
    %7 = vector.broadcast %cst_5 : f32 to vector<16x128xf32>
    %8 = arith.maximumf %6, %7 : vector<16x128xf32>
    %9 = arith.truncf %8 : vector<16x128xf32> to vector<16x128xbf16>
    %c0_6 = arith.constant 0 : index
    %c0_7 = arith.constant 0 : index
    %10 = vector.load %arg4[%c0_6, %c0_7] : memref<128x128xbf16, #tpu.memory_space<vmem>>, vector<128x128xbf16>
    %cst_8 = arith.constant dense<0.000000e+00> : vector<16x128xf32>
    %11 = tpu.matmul %9, %10, %cst_8 {dimension_numbers = #tpu.dot_dimension_numbers<[1], [0], [0], [1], [0, 0, 1, 1], [], []>} : vector<16x128xbf16>, vector<128x128xbf16>, vector<16x128xf32> -> vector<16x128xf32>
    %c0_9 = arith.constant 0 : index
    %c0_10 = arith.constant 0 : index
    %12 = vector.load %arg5[%c0_9, %c0_10] : memref<1x128xf32, #tpu.memory_space<vmem>>, vector<1x128xf32>
    %13 = vector.broadcast %12 : vector<1x128xf32> to vector<16x128xf32>
    %14 = arith.addf %11, %13 : vector<16x128xf32>
    %c0_11 = arith.constant 0 : index
    %c0_12 = arith.constant 0 : index
    %15 = vector.load %arg6[%c0_11, %c0_12] : memref<16x128xf32, #tpu.memory_space<vmem>>, vector<16x128xf32>
    tpu.vector_store %arg6[%c0_11, %c0_12], %14 {strides = array<i32>} : memref<16x128xf32, #tpu.memory_space<vmem>>, vector<16x128xf32>,
    return
  }
  func.func @transform_0(%arg0: i32) -> (i32, i32) {
    %c0_i32 = arith.constant 0 : i32
    %c0_i32_0 = arith.constant 0 : i32
    return %arg0, %c0_i32 : i32, i32
  }
  func.func @transform_1(%arg0: i32) -> (i32, i32) {
    %c0_i32 = arith.constant 0 : i32
    %c0_i32_0 = arith.constant 0 : i32
    %c0_i32_1 = arith.constant 0 : i32
    return %c0_i32, %c0_i32_0 : i32, i32
  }
  func.func @transform_2(%arg0: i32) -> (i32, i32) {
    %c0_i32 = arith.constant 0 : i32
    %c0_i32_0 = arith.constant 0 : i32
    %c0_i32_1 = arith.constant 0 : i32
    return %c0_i32, %c0_i32_0 : i32, i32
  }
  func.func @transform_3(%arg0: i32) -> (i32, i32) {
    %c0_i32 = arith.constant 0 : i32
    %c0_i32_0 = arith.constant 0 : i32
    %c0_i32_1 = arith.constant 0 : i32
    return %c0_i32, %c0_i32_0 : i32, i32
  }
  func.func @transform_4(%arg0: i32) -> (i32, i32) {
    %c0_i32 = arith.constant 0 : i32
    %c0_i32_0 = arith.constant 0 : i32
    %c0_i32_1 = arith.constant 0 : i32
    return %c0_i32, %c0_i32_0 : i32, i32
  }
  func.func @transform_5(%arg0: i32) -> (i32, i32) {
    %c0_i32 = arith.constant 0 : i32
    %c0_i32_0 = arith.constant 0 : i32
    return %arg0, %c0_i32 : i32, i32
  }
}

</mosaic_0001>

<llo_original>
// kernel: mlp_forward.1
$region0: #{mlp_forward.1}
  #allocation0 [shape = 'u32[]', space=smem, size = 0x4, offset = 0x4, fixed_abs, tag = 'smem constant byte address 0x4 - core index']
  #allocation1 [shape = 'u32[72,128]{1,0:T(1,128)}', space=vmem, size = 0x9000, scoped, tag = 'internal scratch']
  %s0 = inlined_call_operand.vmem [shape: f32[16,128], index: 0, kind: input, shape index: {}]
  %s1 = inlined_call_operand.hbm [shape: bf16[128,128], index: 1, kind: input, shape index: {}]
  %s2 = inlined_call_operand.vmem [shape: f32[1,128], index: 2, kind: input, shape index: {}]
  %s3 = inlined_call_operand.hbm [shape: bf16[128,128], index: 3, kind: input, shape index: {}]
  %s4 = inlined_call_operand.vmem [shape: f32[1,128], index: 4, kind: input, shape index: {}]
  %s5 = inlined_call_operand.vmem [shape: f32[16,128], index: 5, kind: output, shape index: {}]
  %s6 = sld [smem:[#allocation0]]
  $region38: #{mlp_forward.1} parent=0
    _
  %s8 = ssub.s32 1, %s6
  %s9 = scalar_select 0, %s8, %s6
  $region1: #{mlp_forward.1} parent=0
    #allocation2 [shape = 'u8[32768]{0}', space=vmem, size = 0x8000, scoped, tag = 'input window, operand 1, single buffered']
    #allocation3 [shape = 's32[1]{0}', space=sflag, size = 0x4, scoped, tag = 'scoped memory for mlp_forward.1']
    #allocation4 [shape = 'u8[32768]{0}', space=vmem, size = 0x8000, scoped, tag = 'input window, operand 3, single buffered']
    #allocation5 [shape = 's32[1]{0}', space=sflag, size = 0x4, scoped, tag = 'scoped memory for mlp_forward.1']
    %10 = vsyncpa [#allocation3], 0
    %11 = vsyncpa [#allocation5], 0
    // Predicated region
    $region2: #{mlp_forward.1} parent=1 // pred_check
      _
    $region3: #{mlp_forward.1} parent=1 // pred_check_branch
      %13 = sbr.rel (0) target = $region5
    $region4: #{mlp_forward.1} parent=1 // pred_region
      _
    $region5: #{mlp_forward.1} parent=1 // pred_fallthru
      _
    // Predicated region
    $region6: #{mlp_forward.1} parent=1 // pred_check
      _
    $region7: #{mlp_forward.1} parent=1 // pred_check_branch
      %15 = sbr.rel (0) target = $region9
    $region8: #{mlp_forward.1} parent=1 // pred_region
      %17 = vsyncadd [#allocation3], 0
      %s18 = sshll.u32 %s1, 4
      %s19 = int_to_ptr.hbm [resolvable:$true] %s18
      %s20 = sshll.u32 [#allocation2], 4
      %s21 = int_to_ptr.vmem [resolvable:$true] %s20
      %26 = dma.hbm_to_vmem [thread:$0]  %s19, 1024, %s21, [#allocation3], 64, 64, 4
    $region9: #{mlp_forward.1} parent=1 // pred_fallthru
      _
    // Predicated region
    $region10: #{mlp_forward.1} parent=1 // pred_check
      _
    $region11: #{mlp_forward.1} parent=1 // pred_check_branch
      %28 = sbr.rel (0) target = $region13
    $region12: #{mlp_forward.1} parent=1 // pred_region
      _
    $region13: #{mlp_forward.1} parent=1 // pred_fallthru
      _
    // Predicated region
    $region14: #{mlp_forward.1} parent=1 // pred_check
      _
    $region15: #{mlp_forward.1} parent=1 // pred_check_branch
      %30 = sbr.rel (0) target = $region17
    $region16: #{mlp_forward.1} parent=1 // pred_region
      %32 = vsyncadd [#allocation5], 0
      %s33 = sshll.u32 %s3, 4
      %s34 = int_to_ptr.hbm [resolvable:$true] %s33
      %s35 = sshll.u32 [#allocation4], 4
      %s36 = int_to_ptr.vmem [resolvable:$true] %s35
      %41 = dma.hbm_to_vmem [thread:$0]  %s34, 1024, %s36, [#allocation5], 64, 64, 4
    $region17: #{mlp_forward.1} parent=1 // pred_fallthru
      _
    // Predicated region
    $region18: #{mlp_forward.1} parent=1 // pred_check
      _
    $region19: #{mlp_forward.1} parent=1 // pred_check_branch
      %43 = sbr.rel (0) target = $region21
    $region20: #{mlp_forward.1} parent=1 // pred_region
      _
    $region21: #{mlp_forward.1} parent=1 // pred_fallthru
      _
    // Predicated region
    $region22: #{mlp_forward.1} parent=1 // pred_check
      _
    $region23: #{mlp_forward.1} parent=1 // pred_check_branch
      %45 = sbr.rel (0) target = $region25
    $region24: #{mlp_forward.1} parent=1 // pred_region
      %47 = dma.done [#allocation3], 1024
    $region25: #{mlp_forward.1} parent=1 // pred_fallthru
      _
    // Predicated region
    $region26: #{mlp_forward.1} parent=1 // pred_check
      _
    $region27: #{mlp_forward.1} parent=1 // pred_check_branch
      %49 = sbr.rel (0) target = $region29
    $region28: #{mlp_forward.1} parent=1 // pred_region
      %51 = dma.done [#allocation5], 1024
    $region29: #{mlp_forward.1} parent=1 // pred_fallthru
      _
    %v52 = vld [vmem:[%s0] sm:$0xff]
    %v53 = vld [vmem:[%s0 + $0x8] sm:$0xff]
    %v54 = vpack.c.bf16 %v53, %v52
    %v55 = vld [vmem:[#allocation2] sm:$0xf]
    %v56 = vld [vmem:[#allocation2 + $0x4] sm:$0xf]
    %v57 = vld [vmem:[#allocation2 + $0x8] sm:$0xf]
    %v58 = vld [vmem:[#allocation2 + $0xc] sm:$0xf]
    %v59 = vld [vmem:[#allocation2 + $0x10] sm:$0xf]
    %v60 = vld [vmem:[#allocation2 + $0x14] sm:$0xf]
    %v61 = vld [vmem:[#allocation2 + $0x18] sm:$0xf]
    %v62 = vld [vmem:[#allocation2 + $0x1c] sm:$0xf]
    %v63 = vld [vmem:[#allocation2 + $0x20] sm:$0xf]
    %v64 = vld [vmem:[#allocation2 + $0x24] sm:$0xf]
    %v65 = vld [vmem:[#allocation2 + $0x28] sm:$0xf]
    %v66 = vld [vmem:[#allocation2 + $0x2c] sm:$0xf]
    %v67 = vld [vmem:[#allocation2 + $0x30] sm:$0xf]
    %v68 = vld [vmem:[#allocation2 + $0x34] sm:$0xf]
    %v69 = vld [vmem:[#allocation2 + $0x38] sm:$0xf]
    %v70 = vld [vmem:[#allocation2 + $0x3c] sm:$0xf]
    %v71 = vld [vmem:[%s2] sm:$0x1]
    %v73 = vperm.slane %v71, 0
    %v91 = vunpack.c.l.b16 %v55
    %v92 = vunpack.c.l.b16 %v56
    %v93 = vunpack.c.l.b16 %v57
    %v94 = vunpack.c.l.b16 %v58
    %v95 = vunpack.c.l.b16 %v59
    %v96 = vunpack.c.l.b16 %v60
    %v97 = vunpack.c.l.b16 %v61
    %v98 = vunpack.c.l.b16 %v62
    %v99 = vunpack.c.l.b16 %v63
    %v100 = vunpack.c.l.b16 %v64
    %v101 = vunpack.c.l.b16 %v65
    %v102 = vunpack.c.l.b16 %v66
    %v103 = vunpack.c.l.b16 %v67
    %v104 = vunpack.c.l.b16 %v68
    %v105 = vunpack.c.l.b16 %v69
    %v106 = vunpack.c.l.b16 %v70
    %v107 = vpack.c.b16 %v92, %v91
    %v108 = vpack.c.b16 %v94, %v93
    %v109 = vpack.c.b16 %v96, %v95
    %v110 = vpack.c.b16 %v98, %v97
    %v111 = vpack.c.b16 %v100, %v99
    %v112 = vpack.c.b16 %v102, %v101
    %v113 = vpack.c.b16 %v104, %v103
    %v114 = vpack.c.b16 %v106, %v105
    %123 = vmatpush.bf16.msra.mxu0 %v114
    %124 = vmatpush.bf16.msra.mxu0 %v113
    %125 = vmatpush.bf16.msra.mxu0 %v112
    %126 = vmatpush.bf16.msra.mxu0 %v111
    %127 = vmatpush.bf16.msra.mxu0 %v110
    %128 = vmatpush.bf16.msra.mxu0 %v109
    %129 = vmatpush.bf16.msra.mxu0 %v108
    %130 = vmatpush.bf16.msra.mxu0 %v107
    %131 = vmatmul.bf16.gmra.mxu0 %v54
    %v132 = vpop.f32.mrf.mxu0
    %v133 = vadd.f32 %v73, %v132
    %v134 = vpop.f32.mrf.mxu0
    %v135 = vadd.f32 %v73, %v134
    %136 = vdwg.mxu0
    %v137 = vmax.f32 %v133, 0.0
    %v138 = vmax.f32 %v135, 0.0
    %v139 = vpack.c.bf16 %v138, %v137
    %v140 = vld [vmem:[#allocation4] sm:$0xf]
    %v141 = vld [vmem:[#allocation4 + $0x4] sm:$0xf]
    %v142 = vld [vmem:[#allocation4 + $0x8] sm:$0xf]
    %v143 = vld [vmem:[#allocation4 + $0xc] sm:$0xf]
    %v144 = vld [vmem:[#allocation4 + $0x10] sm:$0xf]
    %v145 = vld [vmem:[#allocation4 + $0x14] sm:$0xf]
    %v146 = vld [vmem:[#allocation4 + $0x18] sm:$0xf]
    %v147 = vld [vmem:[#allocation4 + $0x1c] sm:$0xf]
    %v148 = vld [vmem:[#allocation4 + $0x20] sm:$0xf]
    %v149 = vld [vmem:[#allocation4 + $0x24] sm:$0xf]
    %v150 = vld [vmem:[#allocation4 + $0x28] sm:$0xf]
    %v151 = vld [vmem:[#allocation4 + $0x2c] sm:$0xf]
    %v152 = vld [vmem:[#allocation4 + $0x30] sm:$0xf]
    %v153 = vld [vmem:[#allocation4 + $0x34] sm:$0xf]
    %v154 = vld [vmem:[#allocation4 + $0x38] sm:$0xf]
    %v155 = vld [vmem:[#allocation4 + $0x3c] sm:$0xf]
    %v156 = vld [vmem:[%s4] sm:$0x1]
    %v158 = vperm.slane %v156, 0
    %v176 = vunpack.c.l.b16 %v140
    %v177 = vunpack.c.l.b16 %v141
    %v178 = vunpack.c.l.b16 %v142
    %v179 = vunpack.c.l.b16 %v143
    %v180 = vunpack.c.l.b16 %v144
    %v181 = vunpack.c.l.b16 %v145
    %v182 = vunpack.c.l.b16 %v146
    %v183 = vunpack.c.l.b16 %v147
    %v184 = vunpack.c.l.b16 %v148
    %v185 = vunpack.c.l.b16 %v149
    %v186 = vunpack.c.l.b16 %v150
    %v187 = vunpack.c.l.b16 %v151
    %v188 = vunpack.c.l.b16 %v152
    %v189 = vunpack.c.l.b16 %v153
    %v190 = vunpack.c.l.b16 %v154
    %v191 = vunpack.c.l.b16 %v155
    %v192 = vpack.c.b16 %v177, %v176
    %v193 = vpack.c.b16 %v179, %v178
    %v194 = vpack.c.b16 %v181, %v180
    %v195 = vpack.c.b16 %v183, %v182
    %v196 = vpack.c.b16 %v185, %v184
    %v197 = vpack.c.b16 %v187, %v186
    %v198 = vpack.c.b16 %v189, %v188
    %v199 = vpack.c.b16 %v191, %v190
    %208 = vmatpush.bf16.msra.mxu0 %v199
    %209 = vmatpush.bf16.msra.mxu0 %v198
    %210 = vmatpush.bf16.msra.mxu0 %v197
    %211 = vmatpush.bf16.msra.mxu0 %v196
    %212 = vmatpush.bf16.msra.mxu0 %v195
    %213 = vmatpush.bf16.msra.mxu0 %v194
    %214 = vmatpush.bf16.msra.mxu0 %v193
    %215 = vmatpush.bf16.msra.mxu0 %v192
    %216 = vmatmul.bf16.gmra.mxu0 %v139
    %v217 = vpop.f32.mrf.mxu0
    %v218 = vadd.f32 %v158, %v217
    %v219 = vpop.f32.mrf.mxu0
    %v220 = vadd.f32 %v158, %v219
    %221 = vdwg.mxu0
    %222 = vst [vmem:[%s5] sm:$0xff] %v218
    %223 = vst [vmem:[%s5 + $0x8] sm:$0xff] %v220
    // Predicated region
    $region30: #{mlp_forward.1} parent=1 // pred_check
      _
    $region31: #{mlp_forward.1} parent=1 // pred_check_branch
      %225 = sbr.rel (0) target = $region33
    $region32: #{mlp_forward.1} parent=1 // pred_region
      _
    $region33: #{mlp_forward.1} parent=1 // pred_fallthru
      _
    // Predicated region
    $region34: #{mlp_forward.1} parent=1 // pred_check
      _
    $region35: #{mlp_forward.1} parent=1 // pred_check_branch
      %227 = sbr.rel (0) target = $region37
    $region36: #{mlp_forward.1} parent=1 // pred_region
      _
    $region37: #{mlp_forward.1} parent=1 // pred_fallthru
      _
    %228 = vsyncpa [#allocation3], 1
    %229 = vsyncpa [#allocation5], 1

</llo_original>
